<compile_context>
chip_gen: v6e
topology: v6e:2x2x1
jax: 0.10.0
libtpu: 0.0.40
codegen_flags: <defaults>
</compile_context>

<pallas_src>
import functools

import jax
import jax.numpy as jnp
from jax.experimental import pallas as pl
from jax.experimental.pallas import tpu as pltpu


def clip_classifier_kernel(x_ref, w_enc_ref, b_enc_ref, w_fc_ref, b_fc_ref,
                           out_ref, acc_ref):
    """Grid = (batch tiles, K tiles).  Accumulate x @ W_enc over K; on the last
    K step apply biases, the fc matmul and a numerically-stable softmax."""
    k = pl.program_id(1)

    @pl.when(k == 0)
    def _init():
        acc_ref[...] = jnp.zeros_like(acc_ref)

    # x and w_enc arrive in the same dtype (bf16 by default, f32 otherwise);
    # accumulate in f32 on the MXU.
    acc_ref[...] += jnp.dot(x_ref[...], w_enc_ref[...],
                            preferred_element_type=jnp.float32)

    @pl.when(k == pl.num_programs(1) - 1)
    def _finalize():
        # synthetic clip_encoder.encode_image output (f32)
        feats = acc_ref[...] + b_enc_ref[...]            # (tm, d_pad)
        # self.fc = nn.Linear(output_dim, num_classes)   (both dims 128-padded)
        logits = jnp.dot(feats, w_fc_ref[...],
                         preferred_element_type=jnp.float32) + b_fc_ref[...]
        # self.softmax = nn.Softmax(dim=1) -- exact divide: this runs once per
        # batch tile, so the approx reciprocal buys nothing and costs accuracy.
        m = jnp.max(logits, axis=-1, keepdims=True)
        e = jnp.exp(logits - m)
        denom = jnp.sum(e, axis=-1, keepdims=True)
        out_ref[...] = e / denom


def _round_up(x, m):
    return ((x + m - 1) // m) * m


# Tile constants.  tk=1024 halves grid-step overhead vs 512 and still divides
# 3*224*224; tm up to 512 amortizes the per-batch-tile w_enc re-stream.  With
# bf16 streaming these fit comfortably under the 48 MiB VMEM limit on every
# generation (v7x physical VMEM is 64 MiB).
_TK_MAX = 1024
_TM_MAX = 512
_LANES = 128
_SUBLANES = 16          # bf16 sublane packing granularity
_NEG_BIG = -1e9         # padded-class bias: exp(-1e9 - m) == 0 in f32


@functools.partial(jax.jit, static_argnames=("use_bf16", "tm", "tk"))
def clip_classifier_forward(images, w_enc, b_enc, w_fc, b_fc,
                            use_bf16=True, tm=None, tk=None):
    """images: (B, C, H, W) float32 NCHW.  w_fc: (output_dim, num_classes)
    (i.e. the PyTorch nn.Linear weight pre-transposed).
    Returns softmax probs (B, num_classes) in float32."""
    B = images.shape[0]
    feat_in = images.shape[1] * images.shape[2] * images.shape[3]
    output_dim = w_enc.shape[1]
    num_classes = w_fc.shape[1]

    x = images.reshape(B, feat_in)                       # glue reshape

    # ---- batch (M) tiling: pad tiny batches up to a sublane multiple ----
    if tm is None:
        tm = min(_TM_MAX, _round_up(B, _SUBLANES))
    Bp = _round_up(B, tm)
    if Bp != B:
        x = jnp.pad(x, ((0, Bp - B), (0, 0)))

    # ---- K tiling over flattened features (reduction axis, last in grid) ----
    if tk is None:
        tk = feat_in if feat_in <= _TK_MAX else _TK_MAX
    Kp = _round_up(feat_in, tk)
    if Kp != feat_in:
        x = jnp.pad(x, ((0, 0), (0, Kp - feat_in)))
        w_enc = jnp.pad(w_enc, ((0, Kp - feat_in), (0, 0)))

    # ---- lane-dense feature padding: output_dim -> multiple of 128.
    #      Zero w_enc columns / b_enc entries / w_fc rows contribute nothing.
    d_pad = _round_up(output_dim, _LANES)
    if d_pad != output_dim:
        w_enc = jnp.pad(w_enc, ((0, 0), (0, d_pad - output_dim)))
        b_enc = jnp.pad(b_enc, (0, d_pad - output_dim))
        w_fc = jnp.pad(w_fc, ((0, d_pad - output_dim), (0, 0)))

    # ---- lane-dense class padding: zero weight cols + -1e9 bias so padded
    #      classes contribute exp(.)=0 and the softmax denominator is unchanged.
    n_pad = _round_up(num_classes, _LANES)
    if n_pad != num_classes:
        w_fc = jnp.pad(w_fc, ((0, 0), (0, n_pad - num_classes)))
        b_fc = jnp.pad(b_fc.astype(jnp.float32),
                       (0, n_pad - num_classes), constant_values=_NEG_BIG)

    # bf16 streaming of the big operands; everything else stays f32.
    in_dtype = jnp.bfloat16 if use_bf16 else jnp.float32
    x = x.astype(in_dtype)
    w_enc = w_enc.astype(in_dtype)
    b_enc2 = b_enc.reshape(1, d_pad).astype(jnp.float32)
    w_fc = w_fc.astype(jnp.float32)
    b_fc2 = b_fc.reshape(1, n_pad).astype(jnp.float32)

    grid = (Bp // tm, Kp // tk)

    out = pl.pallas_call(
        clip_classifier_kernel,
        out_shape=jax.ShapeDtypeStruct((Bp, n_pad), jnp.float32),
        grid_spec=pltpu.PrefetchScalarGridSpec(
            num_scalar_prefetch=0,
            grid=grid,
            in_specs=[
                pl.BlockSpec((tm, tk), lambda i, k: (i, k)),          # x tile
                pl.BlockSpec((tk, d_pad), lambda i, k: (k, 0)),       # w_enc tile
                pl.BlockSpec((1, d_pad), lambda i, k: (0, 0)),        # b_enc (resident)
                pl.BlockSpec((d_pad, n_pad), lambda i, k: (0, 0)),    # w_fc (resident)
                pl.BlockSpec((1, n_pad), lambda i, k: (0, 0)),        # b_fc (resident)
            ],
            out_specs=pl.BlockSpec((tm, n_pad), lambda i, k: (i, 0)),
            scratch_shapes=[pltpu.VMEM((tm, d_pad), jnp.float32)],
        ),
        compiler_params=pltpu.CompilerParams(
            dimension_semantics=("parallel", "arbitrary"),
            vmem_limit_bytes=48 * 1024 * 1024,
        ),
    )(x, w_enc, b_enc2, w_fc, b_fc2)

    return out[:B, :num_classes]


def reference_forward(images, w_enc, b_enc, w_fc, b_fc):
    """Pure-JAX f32 reference of the same math (for the correctness check)."""
    B = images.shape[0]
    x = images.reshape(B, -1).astype(jnp.float32)
    feats = jnp.dot(x, w_enc, precision=jax.lax.Precision.HIGHEST) + b_enc
    logits = jnp.dot(feats, w_fc, precision=jax.lax.Precision.HIGHEST) + b_fc
    return jax.nn.softmax(logits, axis=1)


if __name__ == "__main__":
    # Small shapes consistent with the module's forward:
    #   images: (B=2, C=4, H=16, W=16) -> encode_image -> (B, output_dim=32)
    #   fc: Linear(32, 100) -> softmax over dim=1
    B, C, H, W = 2, 4, 16, 16
    output_dim = 32
    num_classes = 100
    feat_in = C * H * W  # 1024

    key = jax.random.PRNGKey(0)
    k_img, k_wenc, k_benc, k_wfc, k_bfc = jax.random.split(key, 5)

    images = jax.random.normal(k_img, (B, C, H, W), dtype=jnp.float32)

    # deterministic synthetic parameters
    w_enc = jax.random.normal(k_wenc, (feat_in, output_dim), jnp.float32) * 0.02
    b_enc = jax.random.normal(k_benc, (output_dim,), jnp.float32) * 0.02
    # nn.Linear weight is (num_classes, output_dim); pre-transpose for the kernel
    w_fc_pt = jax.random.normal(k_wfc, (num_classes, output_dim), jnp.float32) * 0.1
    b_fc = jax.random.normal(k_bfc, (num_classes,), jnp.float32) * 0.1
    w_fc = w_fc_pt.T  # (output_dim, num_classes)

    ref = reference_forward(images, w_enc, b_enc, w_fc, b_fc)

    # Default path: bf16 streaming, f32 accumulation, full-K block.
    probs = clip_classifier_forward(images, w_enc, b_enc, w_fc, b_fc)
    probs = jax.block_until_ready(probs)
    assert probs.shape == (B, num_classes)
    # exact divide in the finalize -> rows sum to 1 up to f32 rounding
    assert jnp.allclose(jnp.sum(probs, axis=1), 1.0, atol=1e-4)
    # bf16 inputs vs f32 reference: loose but meaningful tolerance
    assert jnp.allclose(probs, ref, atol=2e-3, rtol=2e-3)

    # f32 path with a forced small tk (4 K tiles) to exercise the accumulator
    # init/accumulate/finalize sequence across grid steps.
    probs_f32 = clip_classifier_forward(images, w_enc, b_enc, w_fc, b_fc,
                                        use_bf16=False, tk=256)
    probs_f32 = jax.block_until_ready(probs_f32)
    assert probs_f32.shape == (B, num_classes)
    assert jnp.allclose(jnp.sum(probs_f32, axis=1), 1.0, atol=1e-4)
    assert jnp.allclose(probs_f32, ref, atol=1e-3, rtol=1e-3)

    print("KERNEL_OK")
</pallas_src>

<mosaic_0001>
module attributes {stable_mosaic.version = 11 : i64} {
  func.func @clip_classifier_kernel(%arg0: i32, %arg1: i32, %arg2: memref<16x1024xbf16, #tpu.memory_space<vmem>>, %arg3: memref<1024x128xbf16, #tpu.memory_space<vmem>>, %arg4: memref<1x128xf32, #tpu.memory_space<vmem>>, %arg5: memref<128x128xf32, #tpu.memory_space<vmem>>, %arg6: memref<1x128xf32, #tpu.memory_space<vmem>>, %arg7: memref<16x128xf32, #tpu.memory_space<vmem>>, %arg8: memref<16x128xf32, #tpu.memory_space<vmem>>) attributes {dimension_semantics = [#tpu.dimension_semantics<parallel>, #tpu.dimension_semantics<arbitrary>], iteration_bounds = array<i64: 1, 1>, scalar_prefetch = 0 : i64, scratch_operands = 1 : i64, tpu.core_type = #tpu.core_type<tc>, window_params = [{transform_indices = @transform_0, window_bounds = array<i64: 16, 1024>}, {transform_indices = @transform_1, window_bounds = array<i64: 1024, 128>}, {pipeline_mode = #tpu.pipeline_mode<synchronous>, transform_indices = @transform_2, window_bounds = array<i64: 1, 128>}, {pipeline_mode = #tpu.pipeline_mode<synchronous>, transform_indices = @transform_3, window_bounds = array<i64: 128, 128>}, {pipeline_mode = #tpu.pipeline_mode<synchronous>, transform_indices = @transform_4, window_bounds = array<i64: 1, 128>}, {transform_indices = @transform_5, window_bounds = array<i64: 16, 128>}]} {
    %c0_i32 = arith.constant 0 : i32
    %0 = arith.cmpi eq, %arg1, %c0_i32 : i32
    %1 = arith.extui %0 : i1 to i32
    %c0_i32_0 = arith.constant 0 : i32
    %2 = arith.cmpi ne, %1, %c0_i32_0 : i32
    scf.if %2 {
      %cst_10 = arith.constant 0.000000e+00 : f32
      %12 = vector.broadcast %cst_10 : f32 to vector<16x128xf32>
      %c0_11 = arith.constant 0 : index
      %c0_12 = arith.constant 0 : index
      %13 = vector.load %arg8[%c0_11, %c0_12] : memref<16x128xf32, #tpu.memory_space<vmem>>, vector<16x128xf32>
      tpu.vector_store %arg8[%c0_11, %c0_12], %12 {strides = array<i32>} : memref<16x128xf32, #tpu.memory_space<vmem>>, vector<16x128xf32>,
    } else {
    }
    %c0 = arith.constant 0 : index
    %c0_1 = arith.constant 0 : index
    %3 = vector.load %arg8[%c0, %c0_1] : memref<16x128xf32, #tpu.memory_space<vmem>>, vector<16x128xf32>
    %c0_2 = arith.constant 0 : index
    %c0_3 = arith.constant 0 : index
    %4 = vector.load %arg2[%c0_2, %c0_3] : memref<16x1024xbf16, #tpu.memory_space<vmem>>, vector<16x1024xbf16>
    %c0_4 = arith.constant 0 : index
    %c0_5 = arith.constant 0 : index
    %5 = vector.load %arg3[%c0_4, %c0_5] : memref<1024x128xbf16, #tpu.memory_space<vmem>>, vector<1024x128xbf16>
    %cst = arith.constant dense<0.000000e+00> : vector<16x128xf32>
    %6 = tpu.matmul %4, %5, %cst {dimension_numbers = #tpu.dot_dimension_numbers<[1], [0], [0], [1], [0, 0, 1, 1], [], []>} : vector<16x1024xbf16>, vector<1024x128xbf16>, vector<16x128xf32> -> vector<16x128xf32>
    %7 = arith.addf %3, %6 : vector<16x128xf32>
    %c0_6 = arith.constant 0 : index
    %c0_7 = arith.constant 0 : index
    %8 = vector.load %arg8[%c0_6, %c0_7] : memref<16x128xf32, #tpu.memory_space<vmem>>, vector<16x128xf32>
    tpu.vector_store %arg8[%c0_6, %c0_7], %7 {strides = array<i32>} : memref<16x128xf32, #tpu.memory_space<vmem>>, vector<16x128xf32>,
    %c0_i32_8 = arith.constant 0 : i32
    %9 = arith.cmpi eq, %arg1, %c0_i32_8 : i32
    %10 = arith.extui %9 : i1 to i32
    %c0_i32_9 = arith.constant 0 : i32
    %11 = arith.cmpi ne, %10, %c0_i32_9 : i32
    scf.if %11 {
      %c0_10 = arith.constant 0 : index
      %c0_11 = arith.constant 0 : index
      %12 = vector.load %arg8[%c0_10, %c0_11] : memref<16x128xf32, #tpu.memory_space<vmem>>, vector<16x128xf32>
      %c0_12 = arith.constant 0 : index
      %c0_13 = arith.constant 0 : index
      %13 = vector.load %arg4[%c0_12, %c0_13] : memref<1x128xf32, #tpu.memory_space<vmem>>, vector<1x128xf32>
      %14 = vector.broadcast %13 : vector<1x128xf32> to vector<16x128xf32>
      %15 = arith.addf %12, %14 : vector<16x128xf32>
      %c0_14 = arith.constant 0 : index
      %c0_15 = arith.constant 0 : index
      %16 = vector.load %arg5[%c0_14, %c0_15] : memref<128x128xf32, #tpu.memory_space<vmem>>, vector<128x128xf32>
      %cst_16 = arith.constant dense<0.000000e+00> : vector<16x128xf32>
      %17 = tpu.matmul %15, %16, %cst_16 {dimension_numbers = #tpu.dot_dimension_numbers<[1], [0], [0], [1], [0, 0, 1, 1], [], []>} : vector<16x128xf32>, vector<128x128xf32>, vector<16x128xf32> -> vector<16x128xf32>
      %c0_17 = arith.constant 0 : index
      %c0_18 = arith.constant 0 : index
      %18 = vector.load %arg6[%c0_17, %c0_18] : memref<1x128xf32, #tpu.memory_space<vmem>>, vector<1x128xf32>
      %19 = vector.broadcast %18 : vector<1x128xf32> to vector<16x128xf32>
      %20 = arith.addf %17, %19 : vector<16x128xf32>
      %cst_19 = arith.constant dense<0xFF800000> : vector<16xf32>
      %21 = vector.multi_reduction <maximumf>, %20, %cst_19 [1] : vector<16x128xf32> to vector<16xf32>
      %22 = vector.shape_cast %21 : vector<16xf32> to vector<16x1xf32>
      %23 = vector.broadcast %22 : vector<16x1xf32> to vector<16x128xf32>
      %24 = arith.subf %20, %23 : vector<16x128xf32>
      %25 = math.exp %24 : vector<16x128xf32>
      %cst_20 = arith.constant dense<0.000000e+00> : vector<16xf32>
      %26 = vector.multi_reduction <add>, %25, %cst_20 [1] : vector<16x128xf32> to vector<16xf32>
      %27 = vector.shape_cast %26 : vector<16xf32> to vector<16x1xf32>
      %28 = vector.broadcast %27 : vector<16x1xf32> to vector<16x128xf32>
      %29 = arith.divf %25, %28 : vector<16x128xf32>
      %c0_21 = arith.constant 0 : index
      %c0_22 = arith.constant 0 : index
      %30 = vector.load %arg7[%c0_21, %c0_22] : memref<16x128xf32, #tpu.memory_space<vmem>>, vector<16x128xf32>
      tpu.vector_store %arg7[%c0_21, %c0_22], %29 {strides = array<i32>} : memref<16x128xf32, #tpu.memory_space<vmem>>, vector<16x128xf32>,
    } else {
    }
    return
  }
  func.func @transform_0(%arg0: i32, %arg1: i32) -> (i32, i32) {
    %c0_i32 = arith.constant 0 : i32
    return %arg0, %arg1 : i32, i32
  }
  func.func @transform_1(%arg0: i32, %arg1: i32) -> (i32, i32) {
    %c0_i32 = arith.constant 0 : i32
    %c0_i32_0 = arith.constant 0 : i32
    return %arg1, %c0_i32 : i32, i32
  }
  func.func @transform_2(%arg0: i32, %arg1: i32) -> (i32, i32) {
    %c0_i32 = arith.constant 0 : i32
    %c0_i32_0 = arith.constant 0 : i32
    %c0_i32_1 = arith.constant 0 : i32
    return %c0_i32, %c0_i32_0 : i32, i32
  }
  func.func @transform_3(%arg0: i32, %arg1: i32) -> (i32, i32) {
    %c0_i32 = arith.constant 0 : i32
    %c0_i32_0 = arith.constant 0 : i32
    %c0_i32_1 = arith.constant 0 : i32
    return %c0_i32, %c0_i32_0 : i32, i32
  }
  func.func @transform_4(%arg0: i32, %arg1: i32) -> (i32, i32) {
    %c0_i32 = arith.constant 0 : i32
    %c0_i32_0 = arith.constant 0 : i32
    %c0_i32_1 = arith.constant 0 : i32
    return %c0_i32, %c0_i32_0 : i32, i32
  }
  func.func @transform_5(%arg0: i32, %arg1: i32) -> (i32, i32) {
    %c0_i32 = arith.constant 0 : i32
    %c0_i32_0 = arith.constant 0 : i32
    return %arg0, %c0_i32 : i32, i32
  }
}

</mosaic_0001>

<llo_original>
// kernel: clip_classifier_forward.1
$region0: #{clip_classifier_forward.1}
  #allocation0 [shape = 'u32[]', space=smem, size = 0x4, offset = 0x4, fixed_abs, tag = 'smem constant byte address 0x4 - core index']
  #allocation1 [shape = 'u32[144,128]{1,0:T(1,128)}', space=vmem, size = 0x12000, scoped, tag = 'internal scratch']
  #allocation2 [shape = 'f32[16,128]{1,0:T(8,128)}', space=vmem, size = 0x2000, scoped, tag = 'scratch operand']
  %s0 = inlined_call_operand.vmem [shape: bf16[16,1024], index: 0, kind: input, shape index: {}]
  %s1 = inlined_call_operand.vmem [shape: bf16[1024,128], index: 1, kind: input, shape index: {}]
  %s2 = inlined_call_operand.vmem [shape: f32[1,128], index: 2, kind: input, shape index: {}]
  %s3 = inlined_call_operand.vmem [shape: f32[128,128], index: 3, kind: input, shape index: {}]
  %s4 = inlined_call_operand.vmem [shape: f32[1,128], index: 4, kind: input, shape index: {}]
  %s5 = inlined_call_operand.vmem [shape: f32[16,128], index: 5, kind: output, shape index: {}]
  %s6 = sld [smem:[#allocation0]]
  $region38: #{clip_classifier_forward.1} parent=0
    _
  %s8 = ssub.s32 1, %s6
  %s9 = scalar_select 0, %s8, %s6
  // Predicated region
  $region2: #{clip_classifier_forward.1} parent=0 // pred_check
    _
  $region3: #{clip_classifier_forward.1} parent=0 // pred_check_branch
    %11 = sbr.rel (0) target = $region5
  $region4: #{clip_classifier_forward.1} parent=0 // pred_region
    _
  $region5: #{clip_classifier_forward.1} parent=0 // pred_fallthru
    _
  // Predicated region
  $region6: #{clip_classifier_forward.1} parent=0 // pred_check
    _
  $region7: #{clip_classifier_forward.1} parent=0 // pred_check_branch
    %13 = sbr.rel (0) target = $region9
  $region8: #{clip_classifier_forward.1} parent=0 // pred_region
    _
  $region9: #{clip_classifier_forward.1} parent=0 // pred_fallthru
    _
  // Predicated region
  $region10: #{clip_classifier_forward.1} parent=0 // pred_check
    _
  $region11: #{clip_classifier_forward.1} parent=0 // pred_check_branch
    %15 = sbr.rel (0) target = $region13
  $region12: #{clip_classifier_forward.1} parent=0 // pred_region
    _
  $region13: #{clip_classifier_forward.1} parent=0 // pred_fallthru
    _
  // Predicated region
  $region14: #{clip_classifier_forward.1} parent=0 // pred_check
    _
  $region15: #{clip_classifier_forward.1} parent=0 // pred_check_branch
    %17 = sbr.rel (0) target = $region17
  $region16: #{clip_classifier_forward.1} parent=0 // pred_region
    _
  $region17: #{clip_classifier_forward.1} parent=0 // pred_fallthru
    _
  // Predicated region
  $region18: #{clip_classifier_forward.1} parent=0 // pred_check
    _
  $region19: #{clip_classifier_forward.1} parent=0 // pred_check_branch
    %19 = sbr.rel (0) target = $region21
  $region20: #{clip_classifier_forward.1} parent=0 // pred_region
    _
  $region21: #{clip_classifier_forward.1} parent=0 // pred_fallthru
    _
  %p21 = scmp.eq.s32.totalorder 0, 0
  // Predicated region
  $region22: #{clip_classifier_forward.1} parent=0 // pred_check
    %p22 = pneg %p21
  $region23: #{clip_classifier_forward.1} parent=0 // pred_check_branch
    %24 = sbr.rel (%p22) target = $region25
  $region24: #{clip_classifier_forward.1} parent=0 // pred_region
    %25 = vst [vmem:[#allocation2] sm:$0xff] 0.0
    %26 = vst [vmem:[#allocation2 + $0x8] sm:$0xff] 0.0
  $region25: #{clip_classifier_forward.1} parent=0 // pred_fallthru
    _
  %v27 = vld [vmem:[#allocation2] sm:$0xff]
  %v28 = vld [vmem:[#allocation2 + $0x8] sm:$0xff]
  %v29 = vld [vmem:[%s0] sm:$0xff]
  %v30 = vld [vmem:[%s0 + $0x8] sm:$0xff]
  %v31 = vld [vmem:[%s0 + $0x10] sm:$0xff]
  %v32 = vld [vmem:[%s0 + $0x18] sm:$0xff]
  %v33 = vld [vmem:[%s0 + $0x20] sm:$0xff]
  %v34 = vld [vmem:[%s0 + $0x28] sm:$0xff]
  %v35 = vld [vmem:[%s0 + $0x30] sm:$0xff]
  %v36 = vld [vmem:[%s0 + $0x38] sm:$0xff]
  %v37 = vld [vmem:[%s1] sm:$0xf]
  %v38 = vld [vmem:[%s1 + $0x4] sm:$0xf]
  %v39 = vld [vmem:[%s1 + $0x8] sm:$0xf]
  %v40 = vld [vmem:[%s1 + $0xc] sm:$0xf]
  %v41 = vld [vmem:[%s1 + $0x10] sm:$0xf]
  %v42 = vld [vmem:[%s1 + $0x14] sm:$0xf]
  %v43 = vld [vmem:[%s1 + $0x18] sm:$0xf]
  %v44 = vld [vmem:[%s1 + $0x1c] sm:$0xf]
  %v45 = vld [vmem:[%s1 + $0x20] sm:$0xf]
  %v46 = vld [vmem:[%s1 + $0x24] sm:$0xf]
  %v47 = vld [vmem:[%s1 + $0x28] sm:$0xf]
  %v48 = vld [vmem:[%s1 + $0x2c] sm:$0xf]
  %v49 = vld [vmem:[%s1 + $0x30] sm:$0xf]
  %v50 = vld [vmem:[%s1 + $0x34] sm:$0xf]
  %v51 = vld [vmem:[%s1 + $0x38] sm:$0xf]
  %v52 = vld [vmem:[%s1 + $0x3c] sm:$0xf]
  %v53 = vld [vmem:[%s1 + $0x40] sm:$0xf]
  %v54 = vld [vmem:[%s1 + $0x44] sm:$0xf]
  %v55 = vld [vmem:[%s1 + $0x48] sm:$0xf]
  %v56 = vld [vmem:[%s1 + $0x4c] sm:$0xf]
  %v57 = vld [vmem:[%s1 + $0x50] sm:$0xf]
  %v58 = vld [vmem:[%s1 + $0x54] sm:$0xf]
  %v59 = vld [vmem:[%s1 + $0x58] sm:$0xf]
  %v60 = vld [vmem:[%s1 + $0x5c] sm:$0xf]
  %v61 = vld [vmem:[%s1 + $0x60] sm:$0xf]
  %v62 = vld [vmem:[%s1 + $0x64] sm:$0xf]
  %v63 = vld [vmem:[%s1 + $0x68] sm:$0xf]
  %v64 = vld [vmem:[%s1 + $0x6c] sm:$0xf]
  %v65 = vld [vmem:[%s1 + $0x70] sm:$0xf]
  %v66 = vld [vmem:[%s1 + $0x74] sm:$0xf]
  %v67 = vld [vmem:[%s1 + $0x78] sm:$0xf]
  %v68 = vld [vmem:[%s1 + $0x7c] sm:$0xf]
  %v69 = vld [vmem:[%s1 + $0x80] sm:$0xf]
  %v70 = vld [vmem:[%s1 + $0x84] sm:$0xf]
  %v71 = vld [vmem:[%s1 + $0x88] sm:$0xf]
  %v72 = vld [vmem:[%s1 + $0x8c] sm:$0xf]
  %v73 = vld [vmem:[%s1 + $0x90] sm:$0xf]
  %v74 = vld [vmem:[%s1 + $0x94] sm:$0xf]
  %v75 = vld [vmem:[%s1 + $0x98] sm:$0xf]
  %v76 = vld [vmem:[%s1 + $0x9c] sm:$0xf]
  %v77 = vld [vmem:[%s1 + $0xa0] sm:$0xf]
  %v78 = vld [vmem:[%s1 + $0xa4] sm:$0xf]
  %v79 = vld [vmem:[%s1 + $0xa8] sm:$0xf]
  %v80 = vld [vmem:[%s1 + $0xac] sm:$0xf]
  %v81 = vld [vmem:[%s1 + $0xb0] sm:$0xf]
  %v82 = vld [vmem:[%s1 + $0xb4] sm:$0xf]
  %v83 = vld [vmem:[%s1 + $0xb8] sm:$0xf]
  %v84 = vld [vmem:[%s1 + $0xbc] sm:$0xf]
  %v85 = vld [vmem:[%s1 + $0xc0] sm:$0xf]
  %v86 = vld [vmem:[%s1 + $0xc4] sm:$0xf]
  %v87 = vld [vmem:[%s1 + $0xc8] sm:$0xf]
  %v88 = vld [vmem:[%s1 + $0xcc] sm:$0xf]
  %v89 = vld [vmem:[%s1 + $0xd0] sm:$0xf]
  %v90 = vld [vmem:[%s1 + $0xd4] sm:$0xf]
  %v91 = vld [vmem:[%s1 + $0xd8] sm:$0xf]
  %v92 = vld [vmem:[%s1 + $0xdc] sm:$0xf]
  %v93 = vld [vmem:[%s1 + $0xe0] sm:$0xf]
  %v94 = vld [vmem:[%s1 + $0xe4] sm:$0xf]
  %v95 = vld [vmem:[%s1 + $0xe8] sm:$0xf]
  %v96 = vld [vmem:[%s1 + $0xec] sm:$0xf]
  %v97 = vld [vmem:[%s1 + $0xf0] sm:$0xf]
  %v98 = vld [vmem:[%s1 + $0xf4] sm:$0xf]
  %v99 = vld [vmem:[%s1 + $0xf8] sm:$0xf]
  %v100 = vld [vmem:[%s1 + $0xfc] sm:$0xf]
  %v101 = vld [vmem:[%s1 + $0x100] sm:$0xf]
  %v102 = vld [vmem:[%s1 + $0x104] sm:$0xf]
  %v103 = vld [vmem:[%s1 + $0x108] sm:$0xf]
  %v104 = vld [vmem:[%s1 + $0x10c] sm:$0xf]
  %v105 = vld [vmem:[%s1 + $0x110] sm:$0xf]
  %v106 = vld [vmem:[%s1 + $0x114] sm:$0xf]
  %v107 = vld [vmem:[%s1 + $0x118] sm:$0xf]
  %v108 = vld [vmem:[%s1 + $0x11c] sm:$0xf]
  %v109 = vld [vmem:[%s1 + $0x120] sm:$0xf]
  %v110 = vld [vmem:[%s1 + $0x124] sm:$0xf]
  %v111 = vld [vmem:[%s1 + $0x128] sm:$0xf]
  %v112 = vld [vmem:[%s1 + $0x12c] sm:$0xf]
  %v113 = vld [vmem:[%s1 + $0x130] sm:$0xf]
  %v114 = vld [vmem:[%s1 + $0x134] sm:$0xf]
  %v115 = vld [vmem:[%s1 + $0x138] sm:$0xf]
  %v116 = vld [vmem:[%s1 + $0x13c] sm:$0xf]
  %v117 = vld [vmem:[%s1 + $0x140] sm:$0xf]
  %v118 = vld [vmem:[%s1 + $0x144] sm:$0xf]
  %v119 = vld [vmem:[%s1 + $0x148] sm:$0xf]
  %v120 = vld [vmem:[%s1 + $0x14c] sm:$0xf]
  %v121 = vld [vmem:[%s1 + $0x150] sm:$0xf]
  %v122 = vld [vmem:[%s1 + $0x154] sm:$0xf]
  %v123 = vld [vmem:[%s1 + $0x158] sm:$0xf]
  %v124 = vld [vmem:[%s1 + $0x15c] sm:$0xf]
  %v125 = vld [vmem:[%s1 + $0x160] sm:$0xf]
  %v126 = vld [vmem:[%s1 + $0x164] sm:$0xf]
  %v127 = vld [vmem:[%s1 + $0x168] sm:$0xf]
  %v128 = vld [vmem:[%s1 + $0x16c] sm:$0xf]
  %v129 = vld [vmem:[%s1 + $0x170] sm:$0xf]
  %v130 = vld [vmem:[%s1 + $0x174] sm:$0xf]
  %v131 = vld [vmem:[%s1 + $0x178] sm:$0xf]
  %v132 = vld [vmem:[%s1 + $0x17c] sm:$0xf]
  %v133 = vld [vmem:[%s1 + $0x180] sm:$0xf]
  %v134 = vld [vmem:[%s1 + $0x184] sm:$0xf]
  %v135 = vld [vmem:[%s1 + $0x188] sm:$0xf]
  %v136 = vld [vmem:[%s1 + $0x18c] sm:$0xf]
  %v137 = vld [vmem:[%s1 + $0x190] sm:$0xf]
  %v138 = vld [vmem:[%s1 + $0x194] sm:$0xf]
  %v139 = vld [vmem:[%s1 + $0x198] sm:$0xf]
  %v140 = vld [vmem:[%s1 + $0x19c] sm:$0xf]
  %v141 = vld [vmem:[%s1 + $0x1a0] sm:$0xf]
  %v142 = vld [vmem:[%s1 + $0x1a4] sm:$0xf]
  %v143 = vld [vmem:[%s1 + $0x1a8] sm:$0xf]
  %v144 = vld [vmem:[%s1 + $0x1ac] sm:$0xf]
  %v145 = vld [vmem:[%s1 + $0x1b0] sm:$0xf]
  %v146 = vld [vmem:[%s1 + $0x1b4] sm:$0xf]
  %v147 = vld [vmem:[%s1 + $0x1b8] sm:$0xf]
  %v148 = vld [vmem:[%s1 + $0x1bc] sm:$0xf]
  %v149 = vld [vmem:[%s1 + $0x1c0] sm:$0xf]
  %v150 = vld [vmem:[%s1 + $0x1c4] sm:$0xf]
  %v151 = vld [vmem:[%s1 + $0x1c8] sm:$0xf]
  %v152 = vld [vmem:[%s1 + $0x1cc] sm:$0xf]
  %v153 = vld [vmem:[%s1 + $0x1d0] sm:$0xf]
  %v154 = vld [vmem:[%s1 + $0x1d4] sm:$0xf]
  %v155 = vld [vmem:[%s1 + $0x1d8] sm:$0xf]
  %v156 = vld [vmem:[%s1 + $0x1dc] sm:$0xf]
  %v157 = vld [vmem:[%s1 + $0x1e0] sm:$0xf]
  %v158 = vld [vmem:[%s1 + $0x1e4] sm:$0xf]
  %v159 = vld [vmem:[%s1 + $0x1e8] sm:$0xf]
  %v160 = vld [vmem:[%s1 + $0x1ec] sm:$0xf]
  %v161 = vld [vmem:[%s1 + $0x1f0] sm:$0xf]
  %v162 = vld [vmem:[%s1 + $0x1f4] sm:$0xf]
  %v163 = vld [vmem:[%s1 + $0x1f8] sm:$0xf]
  %v164 = vld [vmem:[%s1 + $0x1fc] sm:$0xf]
  %v173 = vunpack.c.l.b16 %v29
  %v174 = vunpack.c.h.b16 %v29
  %v175 = vunpack.c.l.b16 %v30
  %v176 = vunpack.c.h.b16 %v30
  %v177 = vunpack.c.l.b16 %v31
  %v178 = vunpack.c.h.b16 %v31
  %v179 = vunpack.c.l.b16 %v32
  %v180 = vunpack.c.h.b16 %v32
  %v181 = vunpack.c.l.b16 %v33
  %v182 = vunpack.c.h.b16 %v33
  %v183 = vunpack.c.l.b16 %v34
  %v184 = vunpack.c.h.b16 %v34
  %v185 = vunpack.c.l.b16 %v35
  %v186 = vunpack.c.h.b16 %v35
  %v187 = vunpack.c.l.b16 %v36
  %v188 = vunpack.c.h.b16 %v36
  %v189 = vpack.c.b16 %v181, %v173
  %v190 = vpack.c.b16 %v182, %v174
  %v191 = vpack.c.b16 %v183, %v175
  %v192 = vpack.c.b16 %v184, %v176
  %v193 = vpack.c.b16 %v185, %v177
  %v194 = vpack.c.b16 %v186, %v178
  %v195 = vpack.c.b16 %v187, %v179
  %v196 = vpack.c.b16 %v188, %v180
  %v333 = vunpack.c.l.b16 %v37
  %v334 = vunpack.c.l.b16 %v38
  %v335 = vunpack.c.l.b16 %v39
  %v336 = vunpack.c.l.b16 %v40
  %v337 = vunpack.c.l.b16 %v41
  %v338 = vunpack.c.l.b16 %v42
  %v339 = vunpack.c.l.b16 %v43
  %v340 = vunpack.c.l.b16 %v44
  %v341 = vunpack.c.l.b16 %v45
  %v342 = vunpack.c.l.b16 %v46
  %v343 = vunpack.c.l.b16 %v47
  %v344 = vunpack.c.l.b16 %v48
  %v345 = vunpack.c.l.b16 %v49
  %v346 = vunpack.c.l.b16 %v50
  %v347 = vunpack.c.l.b16 %v51
  %v348 = vunpack.c.l.b16 %v52
  %v349 = vunpack.c.l.b16 %v53
  %v350 = vunpack.c.l.b16 %v54
  %v351 = vunpack.c.l.b16 %v55
  %v352 = vunpack.c.l.b16 %v56
  %v353 = vunpack.c.l.b16 %v57
  %v354 = vunpack.c.l.b16 %v58
  %v355 = vunpack.c.l.b16 %v59
  %v356 = vunpack.c.l.b16 %v60
  %v357 = vunpack.c.l.b16 %v61
  %v358 = vunpack.c.l.b16 %v62
  %v359 = vunpack.c.l.b16 %v63
  %v360 = vunpack.c.l.b16 %v64
  %v361 = vunpack.c.l.b16 %v65
  %v362 = vunpack.c.l.b16 %v66
  %v363 = vunpack.c.l.b16 %v67
  %v364 = vunpack.c.l.b16 %v68
  %v365 = vunpack.c.l.b16 %v69
  %v366 = vunpack.c.l.b16 %v70
  %v367 = vunpack.c.l.b16 %v71
  %v368 = vunpack.c.l.b16 %v72
  %v369 = vunpack.c.l.b16 %v73
  %v370 = vunpack.c.l.b16 %v74
  %v371 = vunpack.c.l.b16 %v75
  %v372 = vunpack.c.l.b16 %v76
  %v373 = vunpack.c.l.b16 %v77
  %v374 = vunpack.c.l.b16 %v78
  %v375 = vunpack.c.l.b16 %v79
  %v376 = vunpack.c.l.b16 %v80
  %v377 = vunpack.c.l.b16 %v81
  %v378 = vunpack.c.l.b16 %v82
  %v379 = vunpack.c.l.b16 %v83
  %v380 = vunpack.c.l.b16 %v84
  %v381 = vunpack.c.l.b16 %v85
  %v382 = vunpack.c.l.b16 %v86
  %v383 = vunpack.c.l.b16 %v87
  %v384 = vunpack.c.l.b16 %v88
  %v385 = vunpack.c.l.b16 %v89
  %v386 = vunpack.c.l.b16 %v90
  %v387 = vunpack.c.l.b16 %v91
  %v388 = vunpack.c.l.b16 %v92
  %v389 = vunpack.c.l.b16 %v93
  %v390 = vunpack.c.l.b16 %v94
  %v391 = vunpack.c.l.b16 %v95
  %v392 = vunpack.c.l.b16 %v96
  %v393 = vunpack.c.l.b16 %v97
  %v394 = vunpack.c.l.b16 %v98
  %v395 = vunpack.c.l.b16 %v99
  %v396 = vunpack.c.l.b16 %v100
  %v397 = vunpack.c.l.b16 %v101
  %v398 = vunpack.c.l.b16 %v102
  %v399 = vunpack.c.l.b16 %v103
  %v400 = vunpack.c.l.b16 %v104
  %v401 = vunpack.c.l.b16 %v105
  %v402 = vunpack.c.l.b16 %v106
  %v403 = vunpack.c.l.b16 %v107
  %v404 = vunpack.c.l.b16 %v108
  %v405 = vunpack.c.l.b16 %v109
  %v406 = vunpack.c.l.b16 %v110
  %v407 = vunpack.c.l.b16 %v111
  %v408 = vunpack.c.l.b16 %v112
  %v409 = vunpack.c.l.b16 %v113
  %v410 = vunpack.c.l.b16 %v114
  %v411 = vunpack.c.l.b16 %v115
  %v412 = vunpack.c.l.b16 %v116
  %v413 = vunpack.c.l.b16 %v117
  %v414 = vunpack.c.l.b16 %v118
  %v415 = vunpack.c.l.b16 %v119
  %v416 = vunpack.c.l.b16 %v120
  %v417 = vunpack.c.l.b16 %v121
  %v418 = vunpack.c.l.b16 %v122
  %v419 = vunpack.c.l.b16 %v123
  %v420 = vunpack.c.l.b16 %v124
  %v421 = vunpack.c.l.b16 %v125
  %v422 = vunpack.c.l.b16 %v126
  %v423 = vunpack.c.l.b16 %v127
  %v424 = vunpack.c.l.b16 %v128
  %v425 = vunpack.c.l.b16 %v129
  %v426 = vunpack.c.l.b16 %v130
  %v427 = vunpack.c.l.b16 %v131
  %v428 = vunpack.c.l.b16 %v132
  %v429 = vunpack.c.l.b16 %v133
  %v430 = vunpack.c.l.b16 %v134
  %v431 = vunpack.c.l.b16 %v135
  %v432 = vunpack.c.l.b16 %v136
  %v433 = vunpack.c.l.b16 %v137
  %v434 = vunpack.c.l.b16 %v138
  %v435 = vunpack.c.l.b16 %v139
  %v436 = vunpack.c.l.b16 %v140
  %v437 = vunpack.c.l.b16 %v141
  %v438 = vunpack.c.l.b16 %v142
  %v439 = vunpack.c.l.b16 %v143
  %v440 = vunpack.c.l.b16 %v144
  %v441 = vunpack.c.l.b16 %v145
  %v442 = vunpack.c.l.b16 %v146
  %v443 = vunpack.c.l.b16 %v147
  %v444 = vunpack.c.l.b16 %v148
  %v445 = vunpack.c.l.b16 %v149
  %v446 = vunpack.c.l.b16 %v150
  %v447 = vunpack.c.l.b16 %v151
  %v448 = vunpack.c.l.b16 %v152
  %v449 = vunpack.c.l.b16 %v153
  %v450 = vunpack.c.l.b16 %v154
  %v451 = vunpack.c.l.b16 %v155
  %v452 = vunpack.c.l.b16 %v156
  %v453 = vunpack.c.l.b16 %v157
  %v454 = vunpack.c.l.b16 %v158
  %v455 = vunpack.c.l.b16 %v159
  %v456 = vunpack.c.l.b16 %v160
  %v457 = vunpack.c.l.b16 %v161
  %v458 = vunpack.c.l.b16 %v162
  %v459 = vunpack.c.l.b16 %v163
  %v460 = vunpack.c.l.b16 %v164
  %v461 = vpack.c.b16 %v334, %v333
  %v462 = vpack.c.b16 %v336, %v335
  %v463 = vpack.c.b16 %v338, %v337
  %v464 = vpack.c.b16 %v340, %v339
  %v465 = vpack.c.b16 %v342, %v341
  %v466 = vpack.c.b16 %v344, %v343
  %v467 = vpack.c.b16 %v346, %v345
  %v468 = vpack.c.b16 %v348, %v347
  %v469 = vpack.c.b16 %v350, %v349
  %v470 = vpack.c.b16 %v352, %v351
  %v471 = vpack.c.b16 %v354, %v353
  %v472 = vpack.c.b16 %v356, %v355
  %v473 = vpack.c.b16 %v358, %v357
  %v474 = vpack.c.b16 %v360, %v359
  %v475 = vpack.c.b16 %v362, %v361
  %v476 = vpack.c.b16 %v364, %v363
  %v477 = vpack.c.b16 %v366, %v365
  %v478 = vpack.c.b16 %v368, %v367
  %v479 = vpack.c.b16 %v370, %v369
  %v480 = vpack.c.b16 %v372, %v371
  %v481 = vpack.c.b16 %v374, %v373
  %v482 = vpack.c.b16 %v376, %v375
  %v483 = vpack.c.b16 %v378, %v377
  %v484 = vpack.c.b16 %v380, %v379
  %v485 = vpack.c.b16 %v382, %v381
  %v486 = vpack.c.b16 %v384, %v383
  %v487 = vpack.c.b16 %v386, %v385
  %v488 = vpack.c.b16 %v388, %v387
  %v489 = vpack.c.b16 %v390, %v389
  %v490 = vpack.c.b16 %v392, %v391
  %v491 = vpack.c.b16 %v394, %v393
  %v492 = vpack.c.b16 %v396, %v395
  %v493 = vpack.c.b16 %v398, %v397
  %v494 = vpack.c.b16 %v400, %v399
  %v495 = vpack.c.b16 %v402, %v401
  %v496 = vpack.c.b16 %v404, %v403
  %v497 = vpack.c.b16 %v406, %v405
  %v498 = vpack.c.b16 %v408, %v407
  %v499 = vpack.c.b16 %v410, %v409
  %v500 = vpack.c.b16 %v412, %v411
  %v501 = vpack.c.b16 %v414, %v413
  %v502 = vpack.c.b16 %v416, %v415
  %v503 = vpack.c.b16 %v418, %v417
  %v504 = vpack.c.b16 %v420, %v419
  %v505 = vpack.c.b16 %v422, %v421
  %v506 = vpack.c.b16 %v424, %v423
  %v507 = vpack.c.b16 %v426, %v425
  %v508 = vpack.c.b16 %v428, %v427
  %v509 = vpack.c.b16 %v430, %v429
  %v510 = vpack.c.b16 %v432, %v431
  %v511 = vpack.c.b16 %v434, %v433
  %v512 = vpack.c.b16 %v436, %v435
  %v513 = vpack.c.b16 %v438, %v437
  %v514 = vpack.c.b16 %v440, %v439
  %v515 = vpack.c.b16 %v442, %v441
  %v516 = vpack.c.b16 %v444, %v443
  %v517 = vpack.c.b16 %v446, %v445
  %v518 = vpack.c.b16 %v448, %v447
  %v519 = vpack.c.b16 %v450, %v449
  %v520 = vpack.c.b16 %v452, %v451
  %v521 = vpack.c.b16 %v454, %v453
  %v522 = vpack.c.b16 %v456, %v455
  %v523 = vpack.c.b16 %v458, %v457
  %v524 = vpack.c.b16 %v460, %v459
  %589 = vmatprep.subr.bf16.mxu0 0
  %590 = vmatpush1.bf16.msra.mxu0 %v468
  %591 = vmatprep.subr.bf16.mxu0 0
  %592 = vmatpush1.bf16.msra.mxu0 %v467
  %593 = vmatprep.subr.bf16.mxu0 0
  %594 = vmatpush1.bf16.msra.mxu0 %v466
  %595 = vmatprep.subr.bf16.mxu0 0
  %596 = vmatpush1.bf16.msra.mxu0 %v465
  %597 = vmatprep.subr.bf16.mxu0 0
  %598 = vmatpush1.bf16.msra.mxu0 %v464
  %599 = vmatprep.subr.bf16.mxu0 0
  %600 = vmatpush1.bf16.msra.mxu0 %v463
  %601 = vmatprep.subr.bf16.mxu0 0
  %602 = vmatpush1.bf16.msra.mxu0 %v462
  %603 = vmatprep.subr.bf16.mxu0 0
  %604 = vmatpush1.bf16.msra.mxu0 %v461
  %605 = vmatprep.subr.bf16.mxu0 0
  %606 = vmatpush2.bf16.msra.mxu0 %v476
  %607 = vmatprep.subr.bf16.mxu0 0
  %608 = vmatpush2.bf16.msra.mxu0 %v475
  %609 = vmatprep.subr.bf16.mxu0 0
  %610 = vmatpush2.bf16.msra.mxu0 %v474
  %611 = vmatprep.subr.bf16.mxu0 0
  %612 = vmatpush2.bf16.msra.mxu0 %v473
  %613 = vmatprep.subr.bf16.mxu0 0
  %614 = vmatpush2.bf16.msra.mxu0 %v472
  %615 = vmatprep.subr.bf16.mxu0 0
  %616 = vmatpush2.bf16.msra.mxu0 %v471
  %617 = vmatprep.subr.bf16.mxu0 0
  %618 = vmatpush2.bf16.msra.mxu0 %v470
  %619 = vmatprep.subr.bf16.mxu0 0
  %620 = vmatpush2.bf16.msra.mxu0 %v469
  %621 = vmatprep.mubr.bf16.mxu0 %v190
  %622 = vmatmul.mubr.bf16.gmra.mxu0 %v189
  %v623 = vpop.f32.mrf.mxu0
  %v624 = vadd.f32 0.0, %v623
  %v625 = vpop.f32.mrf.mxu0
  %v626 = vpop.f32.mrf.mxu0
  %v627 = vadd.f32 0.0, %v626
  %v628 = vpop.f32.mrf.mxu0
  %629 = vdwg.mxu0
  %630 = vmatprep.subr.bf16.mxu0 0
  %631 = vmatpush1.bf16.msra.mxu0 %v484
  %632 = vmatprep.subr.bf16.mxu0 0
  %633 = vmatpush1.bf16.msra.mxu0 %v483
  %634 = vmatprep.subr.bf16.mxu0 0
  %635 = vmatpush1.bf16.msra.mxu0 %v482
  %636 = vmatprep.subr.bf16.mxu0 0
  %637 = vmatpush1.bf16.msra.mxu0 %v481
  %638 = vmatprep.subr.bf16.mxu0 0
  %639 = vmatpush1.bf16.msra.mxu0 %v480
  %640 = vmatprep.subr.bf16.mxu0 0
  %641 = vmatpush1.bf16.msra.mxu0 %v479
  %642 = vmatprep.subr.bf16.mxu0 0
  %643 = vmatpush1.bf16.msra.mxu0 %v478
  %644 = vmatprep.subr.bf16.mxu0 0
  %645 = vmatpush1.bf16.msra.mxu0 %v477
  %646 = vmatprep.subr.bf16.mxu0 0
  %647 = vmatpush2.bf16.msra.mxu0 %v492
  %648 = vmatprep.subr.bf16.mxu0 0
  %649 = vmatpush2.bf16.msra.mxu0 %v491
  %650 = vmatprep.subr.bf16.mxu0 0
  %651 = vmatpush2.bf16.msra.mxu0 %v490
  %652 = vmatprep.subr.bf16.mxu0 0
  %653 = vmatpush2.bf16.msra.mxu0 %v489
  %654 = vmatprep.subr.bf16.mxu0 0
  %655 = vmatpush2.bf16.msra.mxu0 %v488
  %656 = vmatprep.subr.bf16.mxu0 0
  %657 = vmatpush2.bf16.msra.mxu0 %v487
  %658 = vmatprep.subr.bf16.mxu0 0
  %659 = vmatpush2.bf16.msra.mxu0 %v486
  %660 = vmatprep.subr.bf16.mxu0 0
  %661 = vmatpush2.bf16.msra.mxu0 %v485
  %662 = vmatprep.mubr.bf16.mxu0 %v192
  %663 = vmatmul.mubr.bf16.gmra.mxu0 %v191
  %v664 = vpop.f32.mrf.mxu0
  %v665 = vadd.f32 %v624, %v664
  %v666 = vpop.f32.mrf.mxu0
  %v667 = vpop.f32.mrf.mxu0
  %v668 = vadd.f32 %v627, %v667
  %v669 = vpop.f32.mrf.mxu0
  %670 = vdwg.mxu0
  %671 = vmatprep.subr.bf16.mxu0 0
  %672 = vmatpush1.bf16.msra.mxu0 %v500
  %673 = vmatprep.subr.bf16.mxu0 0
  %674 = vmatpush1.bf16.msra.mxu0 %v499
  %675 = vmatprep.subr.bf16.mxu0 0
  %676 = vmatpush1.bf16.msra.mxu0 %v498
  %677 = vmatprep.subr.bf16.mxu0 0
  %678 = vmatpush1.bf16.msra.mxu0 %v497
  %679 = vmatprep.subr.bf16.mxu0 0
  %680 = vmatpush1.bf16.msra.mxu0 %v496
  %681 = vmatprep.subr.bf16.mxu0 0
  %682 = vmatpush1.bf16.msra.mxu0 %v495
  %683 = vmatprep.subr.bf16.mxu0 0
  %684 = vmatpush1.bf16.msra.mxu0 %v494
  %685 = vmatprep.subr.bf16.mxu0 0
  %686 = vmatpush1.bf16.msra.mxu0 %v493
  %687 = vmatprep.subr.bf16.mxu0 0
  %688 = vmatpush2.bf16.msra.mxu0 %v508
  %689 = vmatprep.subr.bf16.mxu0 0
  %690 = vmatpush2.bf16.msra.mxu0 %v507
  %691 = vmatprep.subr.bf16.mxu0 0
  %692 = vmatpush2.bf16.msra.mxu0 %v506
  %693 = vmatprep.subr.bf16.mxu0 0
  %694 = vmatpush2.bf16.msra.mxu0 %v505
  %695 = vmatprep.subr.bf16.mxu0 0
  %696 = vmatpush2.bf16.msra.mxu0 %v504
  %697 = vmatprep.subr.bf16.mxu0 0
  %698 = vmatpush2.bf16.msra.mxu0 %v503
  %699 = vmatprep.subr.bf16.mxu0 0
  %700 = vmatpush2.bf16.msra.mxu0 %v502
  %701 = vmatprep.subr.bf16.mxu0 0
  %702 = vmatpush2.bf16.msra.mxu0 %v501
  %703 = vmatprep.mubr.bf16.mxu0 %v194
  %704 = vmatmul.mubr.bf16.gmra.mxu0 %v193
  %v705 = vpop.f32.mrf.mxu0
  %v706 = vadd.f32 %v665, %v705
  %v707 = vpop.f32.mrf.mxu0
  %v708 = vpop.f32.mrf.mxu0
  %v709 = vadd.f32 %v668, %v708
  %v710 = vpop.f32.mrf.mxu0
  %711 = vdwg.mxu0
  %712 = vmatprep.subr.bf16.mxu0 0
  %713 = vmatpush1.bf16.msra.mxu0 %v516
  %714 = vmatprep.subr.bf16.mxu0 0
  %715 = vmatpush1.bf16.msra.mxu0 %v515
  %716 = vmatprep.subr.bf16.mxu0 0
  %717 = vmatpush1.bf16.msra.mxu0 %v514
  %718 = vmatprep.subr.bf16.mxu0 0
  %719 = vmatpush1.bf16.msra.mxu0 %v513
  %720 = vmatprep.subr.bf16.mxu0 0
  %721 = vmatpush1.bf16.msra.mxu0 %v512
  %722 = vmatprep.subr.bf16.mxu0 0
  %723 = vmatpush1.bf16.msra.mxu0 %v511
  %724 = vmatprep.subr.bf16.mxu0 0
  %725 = vmatpush1.bf16.msra.mxu0 %v510
  %726 = vmatprep.subr.bf16.mxu0 0
  %727 = vmatpush1.bf16.msra.mxu0 %v509
  %728 = vmatprep.subr.bf16.mxu0 0
  %729 = vmatpush2.bf16.msra.mxu0 %v524
  %730 = vmatprep.subr.bf16.mxu0 0
  %731 = vmatpush2.bf16.msra.mxu0 %v523
  %732 = vmatprep.subr.bf16.mxu0 0
  %733 = vmatpush2.bf16.msra.mxu0 %v522
  %734 = vmatprep.subr.bf16.mxu0 0
  %735 = vmatpush2.bf16.msra.mxu0 %v521
  %736 = vmatprep.subr.bf16.mxu0 0
  %737 = vmatpush2.bf16.msra.mxu0 %v520
  %738 = vmatprep.subr.bf16.mxu0 0
  %739 = vmatpush2.bf16.msra.mxu0 %v519
  %740 = vmatprep.subr.bf16.mxu0 0
  %741 = vmatpush2.bf16.msra.mxu0 %v518
  %742 = vmatprep.subr.bf16.mxu0 0
  %743 = vmatpush2.bf16.msra.mxu0 %v517
  %744 = vmatprep.mubr.bf16.mxu0 %v196
  %745 = vmatmul.mubr.bf16.gmra.mxu0 %v195
  %v746 = vpop.f32.mrf.mxu0
  %v747 = vadd.f32 %v706, %v746
  %v748 = vpop.f32.mrf.mxu0
  %v749 = vpop.f32.mrf.mxu0
  %v750 = vadd.f32 %v709, %v749
  %v751 = vpop.f32.mrf.mxu0
  %752 = vdwg.mxu0
  %v753 = vadd.f32 %v27, %v747
  %v754 = vadd.f32 %v28, %v750
  %755 = vst [vmem:[#allocation2] sm:$0xff] %v753
  %756 = vst [vmem:[#allocation2 + $0x8] sm:$0xff] %v754
  // Predicated region
  $region26: #{clip_classifier_forward.1} parent=0 // pred_check
    %p757 = pneg %p21
  $region27: #{clip_classifier_forward.1} parent=0 // pred_check_branch
    %759 = sbr.rel (%p757) target = $region29
  $region28: #{clip_classifier_forward.1} parent=0 // pred_region
    %v760 = vld [vmem:[#allocation2] sm:$0xff]
    %v761 = vld [vmem:[#allocation2 + $0x8] sm:$0xff]
    %v762 = vld [vmem:[%s2] sm:$0x1]
    %v764 = vlaneseq
    %v765 = vshrl.u32 %v764, 7
    %v766 = vsub.s32 0, %v765
    %v767 = vrot.slane %v762, %v766
    %v769 = vadd.f32 %v760, %v767
    %v770 = vadd.f32 %v761, %v767
    %v771 = vld [vmem:[%s3] sm:$0xff]
    %v772 = vld [vmem:[%s3 + $0x8] sm:$0xff]
    %v773 = vld [vmem:[%s3 + $0x10] sm:$0xff]
    %v774 = vld [vmem:[%s3 + $0x18] sm:$0xff]
    %v775 = vld [vmem:[%s3 + $0x20] sm:$0xff]
    %v776 = vld [vmem:[%s3 + $0x28] sm:$0xff]
    %v777 = vld [vmem:[%s3 + $0x30] sm:$0xff]
    %v778 = vld [vmem:[%s3 + $0x38] sm:$0xff]
    %v779 = vld [vmem:[%s3 + $0x40] sm:$0xff]
    %v780 = vld [vmem:[%s3 + $0x48] sm:$0xff]
    %v781 = vld [vmem:[%s3 + $0x50] sm:$0xff]
    %v782 = vld [vmem:[%s3 + $0x58] sm:$0xff]
    %v783 = vld [vmem:[%s3 + $0x60] sm:$0xff]
    %v784 = vld [vmem:[%s3 + $0x68] sm:$0xff]
    %v785 = vld [vmem:[%s3 + $0x70] sm:$0xff]
    %v786 = vld [vmem:[%s3 + $0x78] sm:$0xff]
    %v787 = vld [vmem:[%s4] sm:$0x1]
    %v789 = vlaneseq
    %v790 = vshrl.u32 %v789, 7
    %v791 = vsub.s32 0, %v790
    %v792 = vrot.slane %v787, %v791
    %794 = vmatprep.subr.mxu0 0.0
    %795 = vmatpush1.msra.mxu0 %v786
    %796 = vmatprep.subr.mxu0 0.0
    %797 = vmatpush1.msra.mxu0 %v785
    %798 = vmatprep.subr.mxu0 0.0
    %799 = vmatpush1.msra.mxu0 %v784
    %800 = vmatprep.subr.mxu0 0.0
    %801 = vmatpush1.msra.mxu0 %v783
    %802 = vmatprep.subr.mxu0 0.0
    %803 = vmatpush1.msra.mxu0 %v782
    %804 = vmatprep.subr.mxu0 0.0
    %805 = vmatpush1.msra.mxu0 %v781
    %806 = vmatprep.subr.mxu0 0.0
    %807 = vmatpush1.msra.mxu0 %v780
    %808 = vmatprep.subr.mxu0 0.0
    %809 = vmatpush1.msra.mxu0 %v779
    %810 = vmatprep.subr.mxu0 0.0
    %811 = vmatpush1.msra.mxu0 %v778
    %812 = vmatprep.subr.mxu0 0.0
    %813 = vmatpush1.msra.mxu0 %v777
    %814 = vmatprep.subr.mxu0 0.0
    %815 = vmatpush1.msra.mxu0 %v776
    %816 = vmatprep.subr.mxu0 0.0
    %817 = vmatpush1.msra.mxu0 %v775
    %818 = vmatprep.subr.mxu0 0.0
    %819 = vmatpush1.msra.mxu0 %v774
    %820 = vmatprep.subr.mxu0 0.0
    %821 = vmatpush1.msra.mxu0 %v773
    %822 = vmatprep.subr.mxu0 0.0
    %823 = vmatpush1.msra.mxu0 %v772
    %824 = vmatprep.subr.mxu0 0.0
    %825 = vmatpush1.msra.mxu0 %v771
    %826 = vmatprep.subr.mxu0 0.0
    %827 = vmatpush2.msra.mxu0 0.0
    %828 = vmatprep.subr.mxu0 0.0
    %829 = vmatpush2.msra.mxu0 0.0
    %830 = vmatprep.subr.mxu0 0.0
    %831 = vmatpush2.msra.mxu0 0.0
    %832 = vmatprep.subr.mxu0 0.0
    %833 = vmatpush2.msra.mxu0 0.0
    %834 = vmatprep.subr.mxu0 0.0
    %835 = vmatpush2.msra.mxu0 0.0
    %836 = vmatprep.subr.mxu0 0.0
    %837 = vmatpush2.msra.mxu0 0.0
    %838 = vmatprep.subr.mxu0 0.0
    %839 = vmatpush2.msra.mxu0 0.0
    %840 = vmatprep.subr.mxu0 0.0
    %841 = vmatpush2.msra.mxu0 0.0
    %842 = vmatprep.subr.mxu0 0.0
    %843 = vmatpush2.msra.mxu0 0.0
    %844 = vmatprep.subr.mxu0 0.0
    %845 = vmatpush2.msra.mxu0 0.0
    %846 = vmatprep.subr.mxu0 0.0
    %847 = vmatpush2.msra.mxu0 0.0
    %848 = vmatprep.subr.mxu0 0.0
    %849 = vmatpush2.msra.mxu0 0.0
    %850 = vmatprep.subr.mxu0 0.0
    %851 = vmatpush2.msra.mxu0 0.0
    %852 = vmatprep.subr.mxu0 0.0
    %853 = vmatpush2.msra.mxu0 0.0
    %854 = vmatprep.subr.mxu0 0.0
    %855 = vmatpush2.msra.mxu0 0.0
    %856 = vmatprep.subr.mxu0 0.0
    %857 = vmatpush2.msra.mxu0 0.0
    %858 = vmatprep.mubr.f32.mxu0 0.0
    %859 = vmatmul.mubr.f32.gmra.mxu0 %v769
    %v860 = vpop.f32.mrf.mxu0
    %v861 = vadd.f32 %v792, %v860
    %v862 = vpop.f32.mrf.mxu0
    %863 = vmatprep.mubr.f32.mxu0 0.0
    %864 = vmatmul.mubr.f32.gmra.mxu0 %v770
    %v865 = vpop.f32.mrf.mxu0
    %v866 = vadd.f32 %v792, %v865
    %v867 = vpop.f32.mrf.mxu0
    %868 = vdwg.mxu0
    %869 = vmax.xlane.f32.xlu0 %v861
    %v870 = vpop.xlane.xlu0 %869
    %871 = vmax.xlane.f32.xlu0 %v866
    %v872 = vpop.xlane.xlu0 %871
    %v873 = vsub.f32 %v861, %v870
    %v874 = vsub.f32 %v866, %v872
    %v875 = vmul.f32 %v873, 1.442695
    %v876 = vpow.pop %v875
    %v877 = vmul.f32 %v874, 1.442695
    %v878 = vpow.pop %v877
    %879 = vadd.xlane.f32.xlu0 %v876
    %v880 = vpop.xlane.xlu0 %879
    %881 = vadd.xlane.f32.xlu0 %v878
    %v882 = vpop.xlane.xlu0 %881
    %v883 = vrcp.pop %v880
    %v884 = vmul.f32 %v876, %v883
    %v885 = vrcp.pop %v882
    %v886 = vmul.f32 %v878, %v885
    %887 = vst [vmem:[%s5] sm:$0xff] %v884
    %888 = vst [vmem:[%s5 + $0x8] sm:$0xff] %v886
  $region29: #{clip_classifier_forward.1} parent=0 // pred_fallthru
    _
  // Predicated region
  $region30: #{clip_classifier_forward.1} parent=0 // pred_check
    _
  $region31: #{clip_classifier_forward.1} parent=0 // pred_check_branch
    %890 = sbr.rel (0) target = $region33
  $region32: #{clip_classifier_forward.1} parent=0 // pred_region
    _
  $region33: #{clip_classifier_forward.1} parent=0 // pred_fallthru
    _
  // Predicated region
  $region34: #{clip_classifier_forward.1} parent=0 // pred_check
    _
  $region35: #{clip_classifier_forward.1} parent=0 // pred_check_branch
    %892 = sbr.rel (0) target = $region37
  $region36: #{clip_classifier_forward.1} parent=0 // pred_region
    _
  $region37: #{clip_classifier_forward.1} parent=0 // pred_fallthru
    _

</llo_original>
